<compile_context>
chip_gen: v6e
topology: v6e:2x2x1
jax: 0.10.0
libtpu: 0.0.40
codegen_flags: <defaults>
</compile_context>

<pallas_src>
import math

import jax
import jax.numpy as jnp
from jax.experimental import pallas as pl
from jax.experimental.pallas import tpu as pltpu


def _round_up(x, m):
    return (x + m - 1) // m * m


def _pick_batch_tile(n_pad128, block_n):
    """Largest multiple of 128 that divides n_pad128 and is <= block_n."""
    best = 128
    t = 128
    limit = min(block_n, n_pad128)
    while t <= limit:
        if n_pad128 % t == 0:
            best = t
        t += 128
    return best


def _discriminator_kernel(c_ref, hpl_ref, hmi_ref, wt_ref, b_ref, out_ref):
    """One batch tile.

    c_ref, hpl_ref, hmi_ref : (TM, H)  VMEM activation tiles
    wt_ref                  : (H, H)   VMEM, holds W^T (resident across tiles)
    b_ref                   : (1,)     SMEM scalar bias
    out_ref                 : (2, TM)  VMEM lane-dense scores
                              row 0 = sc_1, row 1 = sc_2
    """
    # Shared projection: u = c @ W^T   (single MXU matmul, f32 accumulate).
    u = jnp.dot(c_ref[...], wt_ref[...], preferred_element_type=jnp.float32)

    b = b_ref[0].astype(jnp.float32)

    # Bilinear scores: sc[n] = sum_i h[n, i] * u[n, i] + b   (VPU mul + XLU reduce)
    sc1 = jnp.sum(hpl_ref[...].astype(jnp.float32) * u, axis=-1) + b   # (TM,)
    sc2 = jnp.sum(hmi_ref[...].astype(jnp.float32) * u, axis=-1) + b   # (TM,)

    out_ref[0, :] = sc1
    out_ref[1, :] = sc2


def discriminator_forward(c, h_pl, h_mi, weight, bias,
                          s_bias1=None, s_bias2=None, block_n=512):
    """Pallas forward for Discriminator.

    c, h_pl, h_mi : (N, n_h)
    weight        : (n_h, n_h)   (== torch bilinear weight[0])
    bias          : scalar       (== torch bilinear bias[0])
    returns       : (2N, 1) float32 logits
    """
    N, H = c.shape

    # Pad batch to a multiple of 128, then pick a tile that divides it.
    n_pad = _round_up(max(N, 1), 128)
    tm = _pick_batch_tile(n_pad, block_n)

    def pad(x):
        return x if n_pad == N else jnp.pad(x, ((0, n_pad - N), (0, 0)))

    c_p, hpl_p, hmi_p = pad(c), pad(h_pl), pad(h_mi)
    w_t = jnp.asarray(weight).T                              # (H, H): W^T
    b1 = jnp.reshape(jnp.asarray(bias, jnp.float32), (1,))   # SMEM scalar

    # Scoped VMEM budget: double-buffered activations + resident W^T + output.
    act_item = jnp.dtype(c_p.dtype).itemsize
    vmem_needed = (2 * 3 * tm * H * act_item
                   + 2 * H * H * jnp.dtype(w_t.dtype).itemsize
                   + 2 * 2 * tm * 4
                   + (2 << 20))
    vmem_limit = int(min(max(vmem_needed, 32 << 20), 100 << 20))

    scores = pl.pallas_call(
        _discriminator_kernel,
        out_shape=jax.ShapeDtypeStruct((2, n_pad), jnp.float32),
        grid_spec=pltpu.PrefetchScalarGridSpec(
            num_scalar_prefetch=0,
            grid=(n_pad // tm,),
            in_specs=[
                pl.BlockSpec((tm, H), lambda i: (i, 0)),    # c
                pl.BlockSpec((tm, H), lambda i: (i, 0)),    # h_pl
                pl.BlockSpec((tm, H), lambda i: (i, 0)),    # h_mi
                pl.BlockSpec((H, H), lambda i: (0, 0)),     # W^T (resident)
                pl.BlockSpec(memory_space=pltpu.MemorySpace.SMEM),  # bias
            ],
            out_specs=pl.BlockSpec((2, tm), lambda i: (0, i)),
        ),
        compiler_params=pltpu.CompilerParams(
            dimension_semantics=("parallel",),
            vmem_limit_bytes=vmem_limit,
        ),
    )(c_p, hpl_p, hmi_p, w_t, b1)

    sc1 = scores[0, :N].reshape(N, 1)
    sc2 = scores[1, :N].reshape(N, 1)
    # Optional score biases (same semantics as the PyTorch module: added
    # before the concatenation).
    if s_bias1 is not None:
        sc1 = sc1 + s_bias1
    if s_bias2 is not None:
        sc2 = sc2 + s_bias2
    return jnp.concatenate([sc1, sc2], axis=0)               # (2N, 1)


def init_discriminator_params(key, n_h):
    """xavier_uniform init matching torch for Bilinear(n_h, n_h, 1) weight[0]."""
    # torch weight shape (1, n_h, n_h): fan_in = n_h * n_h, fan_out = 1 * n_h
    fan_in = n_h * n_h
    fan_out = n_h
    a = math.sqrt(6.0 / (fan_in + fan_out))
    w = jax.random.uniform(key, (n_h, n_h), jnp.float32, minval=-a, maxval=a)
    b = jnp.float32(0.0)   # bias.data.fill_(0.0)
    return w, b


def _reference(c, h_pl, h_mi, weight, bias, s_bias1=None, s_bias2=None):
    """Pure-JAX reference in the original (h @ W) * c form, full precision."""
    hp = jnp.matmul(h_pl, weight, precision=jax.lax.Precision.HIGHEST)
    hm = jnp.matmul(h_mi, weight, precision=jax.lax.Precision.HIGHEST)
    sc1 = jnp.sum(hp * c, axis=-1, keepdims=True) + bias
    sc2 = jnp.sum(hm * c, axis=-1, keepdims=True) + bias
    if s_bias1 is not None:
        sc1 = sc1 + s_bias1
    if s_bias2 is not None:
        sc2 = sc2 + s_bias2
    return jnp.concatenate([sc1, sc2], axis=0)


if __name__ == "__main__":
    key = jax.random.PRNGKey(0)
    k_w, k_c, k_pl, k_mi = jax.random.split(key, 4)

    # Small test (single tile, padded batch).
    N, n_h = 8, 32
    weight, bias = init_discriminator_params(k_w, n_h)
    c = jax.random.normal(k_c, (N, n_h), jnp.float32)
    h_pl = jax.random.normal(k_pl, (N, n_h), jnp.float32)
    h_mi = jax.random.normal(k_mi, (N, n_h), jnp.float32)

    logits = discriminator_forward(c, h_pl, h_mi, weight, bias)
    jax.block_until_ready(logits)

    ref = _reference(c, h_pl, h_mi, weight, bias)
    assert logits.shape == (2 * N, 1)
    assert jnp.allclose(logits, ref, atol=3e-2, rtol=3e-2), float(
        jnp.max(jnp.abs(logits - ref)))

    # Multi-tile / padded path (grid > 1) with non-zero bias and s_biases.
    N2, H2 = 520, 64
    keys = jax.random.split(jax.random.PRNGKey(1), 5)
    w2, _ = init_discriminator_params(keys[0], H2)
    b2 = jnp.float32(0.123)
    c2 = jax.random.normal(keys[1], (N2, H2), jnp.float32)
    hpl2 = jax.random.normal(keys[2], (N2, H2), jnp.float32)
    hmi2 = jax.random.normal(keys[3], (N2, H2), jnp.float32)
    sb1 = 0.1 * jax.random.normal(keys[4], (N2, 1), jnp.float32)

    out2 = discriminator_forward(c2, hpl2, hmi2, w2, b2,
                                 s_bias1=sb1, s_bias2=0.5)
    jax.block_until_ready(out2)
    ref2 = _reference(c2, hpl2, hmi2, w2, b2, s_bias1=sb1, s_bias2=0.5)
    assert out2.shape == (2 * N2, 1)
    assert jnp.allclose(out2, ref2, atol=3e-2, rtol=3e-2), float(
        jnp.max(jnp.abs(out2 - ref2)))

    print("KERNEL_OK")
</pallas_src>

<mosaic_0001>
module attributes {stable_mosaic.version = 11 : i64} {
  func.func @_discriminator_kernel(%arg0: i32, %arg1: memref<128x32xf32, #tpu.memory_space<vmem>>, %arg2: memref<128x32xf32, #tpu.memory_space<vmem>>, %arg3: memref<128x32xf32, #tpu.memory_space<vmem>>, %arg4: memref<32x32xf32, #tpu.memory_space<vmem>>, %arg5: memref<1xf32, #tpu.memory_space<smem>>, %arg6: memref<2x128xf32, #tpu.memory_space<vmem>>) attributes {dimension_semantics = [#tpu.dimension_semantics<parallel>], iteration_bounds = array<i64: 1>, scalar_prefetch = 0 : i64, scratch_operands = 0 : i64, tpu.core_type = #tpu.core_type<tc>, window_params = [{transform_indices = @transform_0, window_bounds = array<i64: 128, 32>}, {transform_indices = @transform_1, window_bounds = array<i64: 128, 32>}, {transform_indices = @transform_2, window_bounds = array<i64: 128, 32>}, {pipeline_mode = #tpu.pipeline_mode<synchronous>, transform_indices = @transform_3, window_bounds = array<i64: 32, 32>}, {transform_indices = @transform_4, window_bounds = array<i64: 1>}, {transform_indices = @transform_5, window_bounds = array<i64: 2, 128>}]} {
    %c0 = arith.constant 0 : index
    %c0_0 = arith.constant 0 : index
    %0 = vector.load %arg1[%c0, %c0_0] : memref<128x32xf32, #tpu.memory_space<vmem>>, vector<128x32xf32>
    %c0_1 = arith.constant 0 : index
    %c0_2 = arith.constant 0 : index
    %1 = vector.load %arg4[%c0_1, %c0_2] : memref<32x32xf32, #tpu.memory_space<vmem>>, vector<32x32xf32>
    %cst = arith.constant dense<0.000000e+00> : vector<128x32xf32>
    %2 = tpu.matmul %0, %1, %cst {dimension_numbers = #tpu.dot_dimension_numbers<[1], [0], [0], [1], [0, 0, 1, 1], [], []>} : vector<128x32xf32>, vector<32x32xf32>, vector<128x32xf32> -> vector<128x32xf32>
    %c0_3 = arith.constant 0 : index
    %3 = memref.load %arg5[%c0_3] : memref<1xf32, #tpu.memory_space<smem>>
    %c0_4 = arith.constant 0 : index
    %c0_5 = arith.constant 0 : index
    %4 = vector.load %arg2[%c0_4, %c0_5] : memref<128x32xf32, #tpu.memory_space<vmem>>, vector<128x32xf32>
    %5 = arith.mulf %4, %2 : vector<128x32xf32>
    %cst_6 = arith.constant dense<0.000000e+00> : vector<128xf32>
    %6 = vector.multi_reduction <add>, %5, %cst_6 [1] : vector<128x32xf32> to vector<128xf32>
    %7 = vector.broadcast %3 : f32 to vector<128xf32>
    %8 = arith.addf %6, %7 : vector<128xf32>
    %c0_7 = arith.constant 0 : index
    %c0_8 = arith.constant 0 : index
    %9 = vector.load %arg3[%c0_7, %c0_8] : memref<128x32xf32, #tpu.memory_space<vmem>>, vector<128x32xf32>
    %10 = arith.mulf %9, %2 : vector<128x32xf32>
    %cst_9 = arith.constant dense<0.000000e+00> : vector<128xf32>
    %11 = vector.multi_reduction <add>, %10, %cst_9 [1] : vector<128x32xf32> to vector<128xf32>
    %12 = vector.broadcast %3 : f32 to vector<128xf32>
    %13 = arith.addf %11, %12 : vector<128xf32>
    %c0_10 = arith.constant 0 : index
    %c0_11 = arith.constant 0 : index
    %14 = vector.load %arg6[%c0_10, %c0_11] : memref<2x128xf32, #tpu.memory_space<vmem>>, vector<1x128xf32>
    %15 = vector.shape_cast %14 : vector<1x128xf32> to vector<128xf32>
    %16 = vector.shape_cast %8 : vector<128xf32> to vector<1x128xf32>
    tpu.vector_store %arg6[%c0_10, %c0_11], %16 {strides = array<i32>} : memref<2x128xf32, #tpu.memory_space<vmem>>, vector<1x128xf32>,
    %c1 = arith.constant 1 : index
    %c0_12 = arith.constant 0 : index
    %17 = vector.load %arg6[%c1, %c0_12] : memref<2x128xf32, #tpu.memory_space<vmem>>, vector<1x128xf32>
    %18 = vector.shape_cast %17 : vector<1x128xf32> to vector<128xf32>
    %19 = vector.shape_cast %13 : vector<128xf32> to vector<1x128xf32>
    tpu.vector_store %arg6[%c1, %c0_12], %19 {strides = array<i32>} : memref<2x128xf32, #tpu.memory_space<vmem>>, vector<1x128xf32>,
    return
  }
  func.func @transform_0(%arg0: i32) -> (i32, i32) {
    %c0_i32 = arith.constant 0 : i32
    %c0_i32_0 = arith.constant 0 : i32
    return %arg0, %c0_i32 : i32, i32
  }
  func.func @transform_1(%arg0: i32) -> (i32, i32) {
    %c0_i32 = arith.constant 0 : i32
    %c0_i32_0 = arith.constant 0 : i32
    return %arg0, %c0_i32 : i32, i32
  }
  func.func @transform_2(%arg0: i32) -> (i32, i32) {
    %c0_i32 = arith.constant 0 : i32
    %c0_i32_0 = arith.constant 0 : i32
    return %arg0, %c0_i32 : i32, i32
  }
  func.func @transform_3(%arg0: i32) -> (i32, i32) {
    %c0_i32 = arith.constant 0 : i32
    %c0_i32_0 = arith.constant 0 : i32
    %c0_i32_1 = arith.constant 0 : i32
    return %c0_i32, %c0_i32_0 : i32, i32
  }
  func.func @transform_4(%arg0: i32) -> i32 {
    %c0_i32 = arith.constant 0 : i32
    %c0_i32_0 = arith.constant 0 : i32
    return %c0_i32 : i32
  }
  func.func @transform_5(%arg0: i32) -> (i32, i32) {
    %c0_i32 = arith.constant 0 : i32
    %c0_i32_0 = arith.constant 0 : i32
    return %c0_i32, %arg0 : i32, i32
  }
}

</mosaic_0001>

<llo_original>
// kernel: tpu_custom_call.1
$region0: #{tpu_custom_call.1}
  #allocation0 [shape = 'u32[]', space=smem, size = 0x4, offset = 0x4, fixed_abs, tag = 'smem constant byte address 0x4 - core index']
  #allocation1 [shape = 'u32[144,128]{1,0:T(1,128)}', space=vmem, size = 0x12000, scoped, tag = 'internal scratch']
  #allocation2 [shape = 'f32[1]{0:T(128)S(6)}', space=smem, size = 0x200, scoped, tag = 'scoped memory for tpu_custom_call.1']
  %s0 = inlined_call_operand.vmem [shape: f32[128,32], index: 0, kind: input, shape index: {}]
  %s1 = inlined_call_operand.vmem [shape: f32[128,32], index: 1, kind: input, shape index: {}]
  %s2 = inlined_call_operand.vmem [shape: f32[128,32], index: 2, kind: input, shape index: {}]
  %s3 = inlined_call_operand.vmem [shape: f32[32,32], index: 3, kind: input, shape index: {}]
  %s4 = inlined_call_operand.<no memory space> [shape: f32[1], index: 4, kind: input, shape index: {}]
  %s5 = inlined_call_operand.hbm [shape: f32[2,128], index: 5, kind: output, shape index: {}]
  %s6 = sld [smem:[#allocation0]]
  $region30: #{tpu_custom_call.1} parent=0
    _
  %s8 = ssub.s32 1, %s6
  %s9 = scalar_select 0, %s8, %s6
  %10 = sst [smem:[#allocation2]] %s4
  $region1: #{tpu_custom_call.1} parent=0
    #allocation3 [shape = 'u8[1024]{0}', space=vmem, size = 0x400, scoped, tag = 'output window, operand 0, single buffered']
    #allocation4 [shape = 's32[1]{0}', space=sflag, size = 0x4, scoped, tag = 'scoped memory for tpu_custom_call.1']
    %11 = vsyncpa [#allocation4], 0
    // Predicated region
    $region2: #{tpu_custom_call.1} parent=1 // pred_check
      _
    $region3: #{tpu_custom_call.1} parent=1 // pred_check_branch
      %13 = sbr.rel (0) target = $region5
    $region4: #{tpu_custom_call.1} parent=1 // pred_region
      _
    $region5: #{tpu_custom_call.1} parent=1 // pred_fallthru
      _
    // Predicated region
    $region6: #{tpu_custom_call.1} parent=1 // pred_check
      _
    $region7: #{tpu_custom_call.1} parent=1 // pred_check_branch
      %15 = sbr.rel (0) target = $region9
    $region8: #{tpu_custom_call.1} parent=1 // pred_region
      _
    $region9: #{tpu_custom_call.1} parent=1 // pred_fallthru
      _
    // Predicated region
    $region10: #{tpu_custom_call.1} parent=1 // pred_check
      _
    $region11: #{tpu_custom_call.1} parent=1 // pred_check_branch
      %17 = sbr.rel (0) target = $region13
    $region12: #{tpu_custom_call.1} parent=1 // pred_region
      _
    $region13: #{tpu_custom_call.1} parent=1 // pred_fallthru
      _
    // Predicated region
    $region14: #{tpu_custom_call.1} parent=1 // pred_check
      _
    $region15: #{tpu_custom_call.1} parent=1 // pred_check_branch
      %19 = sbr.rel (0) target = $region17
    $region16: #{tpu_custom_call.1} parent=1 // pred_region
      _
    $region17: #{tpu_custom_call.1} parent=1 // pred_fallthru
      _
    // Predicated region
    $region18: #{tpu_custom_call.1} parent=1 // pred_check
      _
    $region19: #{tpu_custom_call.1} parent=1 // pred_check_branch
      %21 = sbr.rel (0) target = $region21
    $region20: #{tpu_custom_call.1} parent=1 // pred_region
      _
    $region21: #{tpu_custom_call.1} parent=1 // pred_fallthru
      _
    %v22 = vld [vmem:[%s0] sm:$0xff]
    %v23 = vld [vmem:[%s0 + $0x8] sm:$0xff]
    %v24 = vld [vmem:[%s0 + $0x10] sm:$0xff]
    %v25 = vld [vmem:[%s0 + $0x18] sm:$0xff]
    %v26 = vld [vmem:[%s0 + $0x20] sm:$0xff]
    %v27 = vld [vmem:[%s0 + $0x28] sm:$0xff]
    %v28 = vld [vmem:[%s0 + $0x30] sm:$0xff]
    %v29 = vld [vmem:[%s0 + $0x38] sm:$0xff]
    %v30 = vld [vmem:[%s0 + $0x40] sm:$0xff]
    %v31 = vld [vmem:[%s0 + $0x48] sm:$0xff]
    %v32 = vld [vmem:[%s0 + $0x50] sm:$0xff]
    %v33 = vld [vmem:[%s0 + $0x58] sm:$0xff]
    %v34 = vld [vmem:[%s0 + $0x60] sm:$0xff]
    %v35 = vld [vmem:[%s0 + $0x68] sm:$0xff]
    %v36 = vld [vmem:[%s0 + $0x70] sm:$0xff]
    %v37 = vld [vmem:[%s0 + $0x78] sm:$0xff]
    %v38 = vld [vmem:[%s3] sm:$0xff]
    %v39 = vld [vmem:[%s3 + $0x8] sm:$0xff]
    %v40 = vld [vmem:[%s3 + $0x10] sm:$0xff]
    %v41 = vld [vmem:[%s3 + $0x18] sm:$0xff]
    %vm42 = vcmask 261120
    %v44 = vsel %vm42, %v22, 0
    %v47 = vsel %vm42, %v23, 0
    %v50 = vsel %vm42, %v24, 0
    %v53 = vsel %vm42, %v25, 0
    %v56 = vsel %vm42, %v26, 0
    %v59 = vsel %vm42, %v27, 0
    %v62 = vsel %vm42, %v28, 0
    %v65 = vsel %vm42, %v29, 0
    %v68 = vsel %vm42, %v30, 0
    %v71 = vsel %vm42, %v31, 0
    %v74 = vsel %vm42, %v32, 0
    %v77 = vsel %vm42, %v33, 0
    %v80 = vsel %vm42, %v34, 0
    %v83 = vsel %vm42, %v35, 0
    %v86 = vsel %vm42, %v36, 0
    %v89 = vsel %vm42, %v37, 0
    %91 = vmatprep.subr.mxu0 0.0
    %92 = vmatpush1.msra.mxu0 0.0
    %93 = vmatprep.subr.mxu0 0.0
    %94 = vmatpush1.msra.mxu0 0.0
    %95 = vmatprep.subr.mxu0 0.0
    %96 = vmatpush1.msra.mxu0 0.0
    %97 = vmatprep.subr.mxu0 0.0
    %98 = vmatpush1.msra.mxu0 0.0
    %99 = vmatprep.subr.mxu0 0.0
    %100 = vmatpush1.msra.mxu0 0.0
    %101 = vmatprep.subr.mxu0 0.0
    %102 = vmatpush1.msra.mxu0 0.0
    %103 = vmatprep.subr.mxu0 0.0
    %104 = vmatpush1.msra.mxu0 0.0
    %105 = vmatprep.subr.mxu0 0.0
    %106 = vmatpush1.msra.mxu0 0.0
    %107 = vmatprep.subr.mxu0 0.0
    %108 = vmatpush1.msra.mxu0 0.0
    %109 = vmatprep.subr.mxu0 0.0
    %110 = vmatpush1.msra.mxu0 0.0
    %111 = vmatprep.subr.mxu0 0.0
    %112 = vmatpush1.msra.mxu0 0.0
    %113 = vmatprep.subr.mxu0 0.0
    %114 = vmatpush1.msra.mxu0 0.0
    %115 = vmatprep.subr.mxu0 0.0
    %116 = vmatpush1.msra.mxu0 %v41
    %117 = vmatprep.subr.mxu0 0.0
    %118 = vmatpush1.msra.mxu0 %v40
    %119 = vmatprep.subr.mxu0 0.0
    %120 = vmatpush1.msra.mxu0 %v39
    %121 = vmatprep.subr.mxu0 0.0
    %122 = vmatpush1.msra.mxu0 %v38
    %123 = vmatprep.subr.mxu0 0.0
    %124 = vmatpush2.msra.mxu0 0.0
    %125 = vmatprep.subr.mxu0 0.0
    %126 = vmatpush2.msra.mxu0 0.0
    %127 = vmatprep.subr.mxu0 0.0
    %128 = vmatpush2.msra.mxu0 0.0
    %129 = vmatprep.subr.mxu0 0.0
    %130 = vmatpush2.msra.mxu0 0.0
    %131 = vmatprep.subr.mxu0 0.0
    %132 = vmatpush2.msra.mxu0 0.0
    %133 = vmatprep.subr.mxu0 0.0
    %134 = vmatpush2.msra.mxu0 0.0
    %135 = vmatprep.subr.mxu0 0.0
    %136 = vmatpush2.msra.mxu0 0.0
    %137 = vmatprep.subr.mxu0 0.0
    %138 = vmatpush2.msra.mxu0 0.0
    %139 = vmatprep.subr.mxu0 0.0
    %140 = vmatpush2.msra.mxu0 0.0
    %141 = vmatprep.subr.mxu0 0.0
    %142 = vmatpush2.msra.mxu0 0.0
    %143 = vmatprep.subr.mxu0 0.0
    %144 = vmatpush2.msra.mxu0 0.0
    %145 = vmatprep.subr.mxu0 0.0
    %146 = vmatpush2.msra.mxu0 0.0
    %147 = vmatprep.subr.mxu0 0.0
    %148 = vmatpush2.msra.mxu0 0.0
    %149 = vmatprep.subr.mxu0 0.0
    %150 = vmatpush2.msra.mxu0 0.0
    %151 = vmatprep.subr.mxu0 0.0
    %152 = vmatpush2.msra.mxu0 0.0
    %153 = vmatprep.subr.mxu0 0.0
    %154 = vmatpush2.msra.mxu0 0.0
    %155 = vmatprep.mubr.f32.mxu0 0.0
    %156 = vmatmul.mubr.f32.gmra.mxu0 %v44
    %v157 = vpop.f32.mrf.mxu0
    %v158 = vadd.f32 0.0, %v157
    %v159 = vpop.f32.mrf.mxu0
    %160 = vmatprep.mubr.f32.mxu0 0.0
    %161 = vmatmul.mubr.f32.gmra.mxu0 %v47
    %v162 = vpop.f32.mrf.mxu0
    %v163 = vadd.f32 0.0, %v162
    %v164 = vpop.f32.mrf.mxu0
    %165 = vmatprep.mubr.f32.mxu0 0.0
    %166 = vmatmul.mubr.f32.gmra.mxu0 %v50
    %v167 = vpop.f32.mrf.mxu0
    %v168 = vadd.f32 0.0, %v167
    %v169 = vpop.f32.mrf.mxu0
    %170 = vmatprep.mubr.f32.mxu0 0.0
    %171 = vmatmul.mubr.f32.gmra.mxu0 %v53
    %v172 = vpop.f32.mrf.mxu0
    %v173 = vadd.f32 0.0, %v172
    %v174 = vpop.f32.mrf.mxu0
    %175 = vmatprep.mubr.f32.mxu0 0.0
    %176 = vmatmul.mubr.f32.gmra.mxu0 %v56
    %v177 = vpop.f32.mrf.mxu0
    %v178 = vadd.f32 0.0, %v177
    %v179 = vpop.f32.mrf.mxu0
    %180 = vmatprep.mubr.f32.mxu0 0.0
    %181 = vmatmul.mubr.f32.gmra.mxu0 %v59
    %v182 = vpop.f32.mrf.mxu0
    %v183 = vadd.f32 0.0, %v182
    %v184 = vpop.f32.mrf.mxu0
    %185 = vmatprep.mubr.f32.mxu0 0.0
    %186 = vmatmul.mubr.f32.gmra.mxu0 %v62
    %v187 = vpop.f32.mrf.mxu0
    %v188 = vadd.f32 0.0, %v187
    %v189 = vpop.f32.mrf.mxu0
    %190 = vmatprep.mubr.f32.mxu0 0.0
    %191 = vmatmul.mubr.f32.gmra.mxu0 %v65
    %v192 = vpop.f32.mrf.mxu0
    %v193 = vadd.f32 0.0, %v192
    %v194 = vpop.f32.mrf.mxu0
    %195 = vmatprep.mubr.f32.mxu0 0.0
    %196 = vmatmul.mubr.f32.gmra.mxu0 %v68
    %v197 = vpop.f32.mrf.mxu0
    %v198 = vadd.f32 0.0, %v197
    %v199 = vpop.f32.mrf.mxu0
    %200 = vmatprep.mubr.f32.mxu0 0.0
    %201 = vmatmul.mubr.f32.gmra.mxu0 %v71
    %v202 = vpop.f32.mrf.mxu0
    %v203 = vadd.f32 0.0, %v202
    %v204 = vpop.f32.mrf.mxu0
    %205 = vmatprep.mubr.f32.mxu0 0.0
    %206 = vmatmul.mubr.f32.gmra.mxu0 %v74
    %v207 = vpop.f32.mrf.mxu0
    %v208 = vadd.f32 0.0, %v207
    %v209 = vpop.f32.mrf.mxu0
    %210 = vmatprep.mubr.f32.mxu0 0.0
    %211 = vmatmul.mubr.f32.gmra.mxu0 %v77
    %v212 = vpop.f32.mrf.mxu0
    %v213 = vadd.f32 0.0, %v212
    %v214 = vpop.f32.mrf.mxu0
    %215 = vmatprep.mubr.f32.mxu0 0.0
    %216 = vmatmul.mubr.f32.gmra.mxu0 %v80
    %v217 = vpop.f32.mrf.mxu0
    %v218 = vadd.f32 0.0, %v217
    %v219 = vpop.f32.mrf.mxu0
    %220 = vmatprep.mubr.f32.mxu0 0.0
    %221 = vmatmul.mubr.f32.gmra.mxu0 %v83
    %v222 = vpop.f32.mrf.mxu0
    %v223 = vadd.f32 0.0, %v222
    %v224 = vpop.f32.mrf.mxu0
    %225 = vmatprep.mubr.f32.mxu0 0.0
    %226 = vmatmul.mubr.f32.gmra.mxu0 %v86
    %v227 = vpop.f32.mrf.mxu0
    %v228 = vadd.f32 0.0, %v227
    %v229 = vpop.f32.mrf.mxu0
    %230 = vmatprep.mubr.f32.mxu0 0.0
    %231 = vmatmul.mubr.f32.gmra.mxu0 %v89
    %v232 = vpop.f32.mrf.mxu0
    %v233 = vadd.f32 0.0, %v232
    %v234 = vpop.f32.mrf.mxu0
    %235 = vdwg.mxu0
    %s236 = sld [smem:[#allocation2]]
    %v237 = vld [vmem:[%s1] sm:$0xff]
    %v238 = vld [vmem:[%s1 + $0x8] sm:$0xff]
    %v239 = vld [vmem:[%s1 + $0x10] sm:$0xff]
    %v240 = vld [vmem:[%s1 + $0x18] sm:$0xff]
    %v241 = vld [vmem:[%s1 + $0x20] sm:$0xff]
    %v242 = vld [vmem:[%s1 + $0x28] sm:$0xff]
    %v243 = vld [vmem:[%s1 + $0x30] sm:$0xff]
    %v244 = vld [vmem:[%s1 + $0x38] sm:$0xff]
    %v245 = vld [vmem:[%s1 + $0x40] sm:$0xff]
    %v246 = vld [vmem:[%s1 + $0x48] sm:$0xff]
    %v247 = vld [vmem:[%s1 + $0x50] sm:$0xff]
    %v248 = vld [vmem:[%s1 + $0x58] sm:$0xff]
    %v249 = vld [vmem:[%s1 + $0x60] sm:$0xff]
    %v250 = vld [vmem:[%s1 + $0x68] sm:$0xff]
    %v251 = vld [vmem:[%s1 + $0x70] sm:$0xff]
    %v252 = vld [vmem:[%s1 + $0x78] sm:$0xff]
    %v253 = vmul.f32 %v237, %v158
    %v254 = vmul.f32 %v238, %v163
    %v255 = vmul.f32 %v239, %v168
    %v256 = vmul.f32 %v240, %v173
    %v257 = vmul.f32 %v241, %v178
    %v258 = vmul.f32 %v242, %v183
    %v259 = vmul.f32 %v243, %v188
    %v260 = vmul.f32 %v244, %v193
    %v261 = vmul.f32 %v245, %v198
    %v262 = vmul.f32 %v246, %v203
    %v263 = vmul.f32 %v247, %v208
    %v264 = vmul.f32 %v248, %v213
    %v265 = vmul.f32 %v249, %v218
    %v266 = vmul.f32 %v250, %v223
    %v267 = vmul.f32 %v251, %v228
    %v268 = vmul.f32 %v252, %v233
    %v269 = vsel %vm42, %v253, 0.0
    %270 = vadd.xlane.f32.xlu0 %v269
    %v271 = vpop.xlane.xlu0 %270
    %v272 = vsel %vm42, %v254, 0.0
    %273 = vadd.xlane.f32.xlu0 %v272
    %v274 = vpop.xlane.xlu0 %273
    %v275 = vsel %vm42, %v255, 0.0
    %276 = vadd.xlane.f32.xlu0 %v275
    %v277 = vpop.xlane.xlu0 %276
    %v278 = vsel %vm42, %v256, 0.0
    %279 = vadd.xlane.f32.xlu0 %v278
    %v280 = vpop.xlane.xlu0 %279
    %v281 = vsel %vm42, %v257, 0.0
    %282 = vadd.xlane.f32.xlu0 %v281
    %v283 = vpop.xlane.xlu0 %282
    %v284 = vsel %vm42, %v258, 0.0
    %285 = vadd.xlane.f32.xlu0 %v284
    %v286 = vpop.xlane.xlu0 %285
    %v287 = vsel %vm42, %v259, 0.0
    %288 = vadd.xlane.f32.xlu0 %v287
    %v289 = vpop.xlane.xlu0 %288
    %v290 = vsel %vm42, %v260, 0.0
    %291 = vadd.xlane.f32.xlu0 %v290
    %v292 = vpop.xlane.xlu0 %291
    %v293 = vsel %vm42, %v261, 0.0
    %294 = vadd.xlane.f32.xlu0 %v293
    %v295 = vpop.xlane.xlu0 %294
    %v296 = vsel %vm42, %v262, 0.0
    %297 = vadd.xlane.f32.xlu0 %v296
    %v298 = vpop.xlane.xlu0 %297
    %v299 = vsel %vm42, %v263, 0.0
    %300 = vadd.xlane.f32.xlu0 %v299
    %v301 = vpop.xlane.xlu0 %300
    %v302 = vsel %vm42, %v264, 0.0
    %303 = vadd.xlane.f32.xlu0 %v302
    %v304 = vpop.xlane.xlu0 %303
    %v305 = vsel %vm42, %v265, 0.0
    %306 = vadd.xlane.f32.xlu0 %v305
    %v307 = vpop.xlane.xlu0 %306
    %v308 = vsel %vm42, %v266, 0.0
    %309 = vadd.xlane.f32.xlu0 %v308
    %v310 = vpop.xlane.xlu0 %309
    %v311 = vsel %vm42, %v267, 0.0
    %312 = vadd.xlane.f32.xlu0 %v311
    %v313 = vpop.xlane.xlu0 %312
    %v314 = vsel %vm42, %v268, 0.0
    %315 = vadd.xlane.f32.xlu0 %v314
    %v316 = vpop.xlane.xlu0 %315
    %v317 = vstv %s236
    %v318 = vadd.f32 %v271, %v317
    %v319 = vadd.f32 %v274, %v317
    %v320 = vadd.f32 %v277, %v317
    %v321 = vadd.f32 %v280, %v317
    %v322 = vadd.f32 %v283, %v317
    %v323 = vadd.f32 %v286, %v317
    %v324 = vadd.f32 %v289, %v317
    %v325 = vadd.f32 %v292, %v317
    %v326 = vadd.f32 %v295, %v317
    %v327 = vadd.f32 %v298, %v317
    %v328 = vadd.f32 %v301, %v317
    %v329 = vadd.f32 %v304, %v317
    %v330 = vadd.f32 %v307, %v317
    %v331 = vadd.f32 %v310, %v317
    %v332 = vadd.f32 %v313, %v317
    %v333 = vadd.f32 %v316, %v317
    %v334 = vld [vmem:[%s2] sm:$0xff]
    %v335 = vld [vmem:[%s2 + $0x8] sm:$0xff]
    %v336 = vld [vmem:[%s2 + $0x10] sm:$0xff]
    %v337 = vld [vmem:[%s2 + $0x18] sm:$0xff]
    %v338 = vld [vmem:[%s2 + $0x20] sm:$0xff]
    %v339 = vld [vmem:[%s2 + $0x28] sm:$0xff]
    %v340 = vld [vmem:[%s2 + $0x30] sm:$0xff]
    %v341 = vld [vmem:[%s2 + $0x38] sm:$0xff]
    %v342 = vld [vmem:[%s2 + $0x40] sm:$0xff]
    %v343 = vld [vmem:[%s2 + $0x48] sm:$0xff]
    %v344 = vld [vmem:[%s2 + $0x50] sm:$0xff]
    %v345 = vld [vmem:[%s2 + $0x58] sm:$0xff]
    %v346 = vld [vmem:[%s2 + $0x60] sm:$0xff]
    %v347 = vld [vmem:[%s2 + $0x68] sm:$0xff]
    %v348 = vld [vmem:[%s2 + $0x70] sm:$0xff]
    %v349 = vld [vmem:[%s2 + $0x78] sm:$0xff]
    %v350 = vmul.f32 %v334, %v158
    %v351 = vmul.f32 %v335, %v163
    %v352 = vmul.f32 %v336, %v168
    %v353 = vmul.f32 %v337, %v173
    %v354 = vmul.f32 %v338, %v178
    %v355 = vmul.f32 %v339, %v183
    %v356 = vmul.f32 %v340, %v188
    %v357 = vmul.f32 %v341, %v193
    %v358 = vmul.f32 %v342, %v198
    %v359 = vmul.f32 %v343, %v203
    %v360 = vmul.f32 %v344, %v208
    %v361 = vmul.f32 %v345, %v213
    %v362 = vmul.f32 %v346, %v218
    %v363 = vmul.f32 %v347, %v223
    %v364 = vmul.f32 %v348, %v228
    %v365 = vmul.f32 %v349, %v233
    %v366 = vsel %vm42, %v350, 0.0
    %367 = vadd.xlane.f32.xlu0 %v366
    %v368 = vpop.xlane.xlu0 %367
    %v369 = vsel %vm42, %v351, 0.0
    %370 = vadd.xlane.f32.xlu0 %v369
    %v371 = vpop.xlane.xlu0 %370
    %v372 = vsel %vm42, %v352, 0.0
    %373 = vadd.xlane.f32.xlu0 %v372
    %v374 = vpop.xlane.xlu0 %373
    %v375 = vsel %vm42, %v353, 0.0
    %376 = vadd.xlane.f32.xlu0 %v375
    %v377 = vpop.xlane.xlu0 %376
    %v378 = vsel %vm42, %v354, 0.0
    %379 = vadd.xlane.f32.xlu0 %v378
    %v380 = vpop.xlane.xlu0 %379
    %v381 = vsel %vm42, %v355, 0.0
    %382 = vadd.xlane.f32.xlu0 %v381
    %v383 = vpop.xlane.xlu0 %382
    %v384 = vsel %vm42, %v356, 0.0
    %385 = vadd.xlane.f32.xlu0 %v384
    %v386 = vpop.xlane.xlu0 %385
    %v387 = vsel %vm42, %v357, 0.0
    %388 = vadd.xlane.f32.xlu0 %v387
    %v389 = vpop.xlane.xlu0 %388
    %v390 = vsel %vm42, %v358, 0.0
    %391 = vadd.xlane.f32.xlu0 %v390
    %v392 = vpop.xlane.xlu0 %391
    %v393 = vsel %vm42, %v359, 0.0
    %394 = vadd.xlane.f32.xlu0 %v393
    %v395 = vpop.xlane.xlu0 %394
    %v396 = vsel %vm42, %v360, 0.0
    %397 = vadd.xlane.f32.xlu0 %v396
    %v398 = vpop.xlane.xlu0 %397
    %v399 = vsel %vm42, %v361, 0.0
    %400 = vadd.xlane.f32.xlu0 %v399
    %v401 = vpop.xlane.xlu0 %400
    %v402 = vsel %vm42, %v362, 0.0
    %403 = vadd.xlane.f32.xlu0 %v402
    %v404 = vpop.xlane.xlu0 %403
    %v405 = vsel %vm42, %v363, 0.0
    %406 = vadd.xlane.f32.xlu0 %v405
    %v407 = vpop.xlane.xlu0 %406
    %v408 = vsel %vm42, %v364, 0.0
    %409 = vadd.xlane.f32.xlu0 %v408
    %v410 = vpop.xlane.xlu0 %409
    %v411 = vsel %vm42, %v365, 0.0
    %412 = vadd.xlane.f32.xlu0 %v411
    %v413 = vpop.xlane.xlu0 %412
    %v414 = vadd.f32 %v368, %v317
    %v415 = vadd.f32 %v371, %v317
    %v416 = vadd.f32 %v374, %v317
    %v417 = vadd.f32 %v377, %v317
    %v418 = vadd.f32 %v380, %v317
    %v419 = vadd.f32 %v383, %v317
    %v420 = vadd.f32 %v386, %v317
    %v421 = vadd.f32 %v389, %v317
    %v422 = vadd.f32 %v392, %v317
    %v423 = vadd.f32 %v395, %v317
    %v424 = vadd.f32 %v398, %v317
    %v425 = vadd.f32 %v401, %v317
    %v426 = vadd.f32 %v404, %v317
    %v427 = vadd.f32 %v407, %v317
    %v428 = vadd.f32 %v410, %v317
    %v429 = vadd.f32 %v413, %v317
    %v446 = vlaneseq
    %v447 = vand.u32 %v446, 127
    %v448 = vlaneseq
    %v449 = vshrl.u32 %v448, 7
    %v450 = vsub.s32 %v447, %v449
    %v451 = vrot.slane %v318, %v450
    %v452 = vadd.s32 %v447, 4294967288
    %v453 = vlaneseq
    %v454 = vshrl.u32 %v453, 7
    %v455 = vsub.s32 %v452, %v454
    %v456 = vrot.slane %v319, %v455
    %vm457 = vcmask 130112
    %v458 = vsel %vm457, %v456, %v451
    %v459 = vadd.s32 %v447, 4294967280
    %v460 = vlaneseq
    %v461 = vshrl.u32 %v460, 7
    %v462 = vsub.s32 %v459, %v461
    %v463 = vrot.slane %v320, %v462
    %vm464 = vcmask 195712
    %v465 = vsel %vm464, %v463, %v458
    %v466 = vadd.s32 %v447, 4294967272
    %v467 = vlaneseq
    %v468 = vshrl.u32 %v467, 7
    %v469 = vsub.s32 %v466, %v468
    %v470 = vrot.slane %v321, %v469
    %vm471 = vcmask 261312
    %v472 = vsel %vm471, %v470, %v465
    %v473 = vadd.s32 %v447, 4294967264
    %v474 = vlaneseq
    %v475 = vshrl.u32 %v474, 7
    %v476 = vsub.s32 %v473, %v475
    %v477 = vrot.slane %v322, %v476
    %vm478 = vcmask 326912
    %v479 = vsel %vm478, %v477, %v472
    %v480 = vadd.s32 %v447, 4294967256
    %v481 = vlaneseq
    %v482 = vshrl.u32 %v481, 7
    %v483 = vsub.s32 %v480, %v482
    %v484 = vrot.slane %v323, %v483
    %vm485 = vcmask 392512
    %v486 = vsel %vm485, %v484, %v479
    %v487 = vadd.s32 %v447, 4294967248
    %v488 = vlaneseq
    %v489 = vshrl.u32 %v488, 7
    %v490 = vsub.s32 %v487, %v489
    %v491 = vrot.slane %v324, %v490
    %vm492 = vcmask 458112
    %v493 = vsel %vm492, %v491, %v486
    %v494 = vadd.s32 %v447, 4294967240
    %v495 = vlaneseq
    %v496 = vshrl.u32 %v495, 7
    %v497 = vsub.s32 %v494, %v496
    %v498 = vrot.slane %v325, %v497
    %vm499 = vcmask 523712
    %v500 = vsel %vm499, %v498, %v493
    %v501 = vadd.s32 %v447, 4294967232
    %v502 = vlaneseq
    %v503 = vshrl.u32 %v502, 7
    %v504 = vsub.s32 %v501, %v503
    %v505 = vrot.slane %v326, %v504
    %vm506 = vcmask 589312
    %v507 = vsel %vm506, %v505, %v500
    %v508 = vadd.s32 %v447, 4294967224
    %v509 = vlaneseq
    %v510 = vshrl.u32 %v509, 7
    %v511 = vsub.s32 %v508, %v510
    %v512 = vrot.slane %v327, %v511
    %vm513 = vcmask 654912
    %v514 = vsel %vm513, %v512, %v507
    %v515 = vadd.s32 %v447, 4294967216
    %v516 = vlaneseq
    %v517 = vshrl.u32 %v516, 7
    %v518 = vsub.s32 %v515, %v517
    %v519 = vrot.slane %v328, %v518
    %vm520 = vcmask 720512
    %v521 = vsel %vm520, %v519, %v514
    %v522 = vadd.s32 %v447, 4294967208
    %v523 = vlaneseq
    %v524 = vshrl.u32 %v523, 7
    %v525 = vsub.s32 %v522, %v524
    %v526 = vrot.slane %v329, %v525
    %vm527 = vcmask 786112
    %v528 = vsel %vm527, %v526, %v521
    %v529 = vadd.s32 %v447, 4294967200
    %v530 = vlaneseq
    %v531 = vshrl.u32 %v530, 7
    %v532 = vsub.s32 %v529, %v531
    %v533 = vrot.slane %v330, %v532
    %vm534 = vcmask 851712
    %v535 = vsel %vm534, %v533, %v528
    %v536 = vadd.s32 %v447, 4294967192
    %v537 = vlaneseq
    %v538 = vshrl.u32 %v537, 7
    %v539 = vsub.s32 %v536, %v538
    %v540 = vrot.slane %v331, %v539
    %vm541 = vcmask 917312
    %v542 = vsel %vm541, %v540, %v535
    %v543 = vadd.s32 %v447, 4294967184
    %v544 = vlaneseq
    %v545 = vshrl.u32 %v544, 7
    %v546 = vsub.s32 %v543, %v545
    %v547 = vrot.slane %v332, %v546
    %vm548 = vcmask 982912
    %v549 = vsel %vm548, %v547, %v542
    %v550 = vadd.s32 %v447, 4294967176
    %v551 = vlaneseq
    %v552 = vshrl.u32 %v551, 7
    %v553 = vsub.s32 %v550, %v552
    %v554 = vrot.slane %v333, %v553
    %vm555 = vcmask 1048512
    %v556 = vsel %vm555, %v554, %v549
    %558 = vst [vmem:[#allocation3] sm:$0x1] %v556
    %v575 = vlaneseq
    %v576 = vshrl.u32 %v575, 7
    %v577 = vsub.s32 %v447, %v576
    %v578 = vrot.slane %v414, %v577
    %v579 = vlaneseq
    %v580 = vshrl.u32 %v579, 7
    %v581 = vsub.s32 %v452, %v580
    %v582 = vrot.slane %v415, %v581
    %v583 = vsel %vm457, %v582, %v578
    %v584 = vlaneseq
    %v585 = vshrl.u32 %v584, 7
    %v586 = vsub.s32 %v459, %v585
    %v587 = vrot.slane %v416, %v586
    %v588 = vsel %vm464, %v587, %v583
    %v589 = vlaneseq
    %v590 = vshrl.u32 %v589, 7
    %v591 = vsub.s32 %v466, %v590
    %v592 = vrot.slane %v417, %v591
    %v593 = vsel %vm471, %v592, %v588
    %v594 = vlaneseq
    %v595 = vshrl.u32 %v594, 7
    %v596 = vsub.s32 %v473, %v595
    %v597 = vrot.slane %v418, %v596
    %v598 = vsel %vm478, %v597, %v593
    %v599 = vlaneseq
    %v600 = vshrl.u32 %v599, 7
    %v601 = vsub.s32 %v480, %v600
    %v602 = vrot.slane %v419, %v601
    %v603 = vsel %vm485, %v602, %v598
    %v604 = vlaneseq
    %v605 = vshrl.u32 %v604, 7
    %v606 = vsub.s32 %v487, %v605
    %v607 = vrot.slane %v420, %v606
    %v608 = vsel %vm492, %v607, %v603
    %v609 = vlaneseq
    %v610 = vshrl.u32 %v609, 7
    %v611 = vsub.s32 %v494, %v610
    %v612 = vrot.slane %v421, %v611
    %v613 = vsel %vm499, %v612, %v608
    %v614 = vlaneseq
    %v615 = vshrl.u32 %v614, 7
    %v616 = vsub.s32 %v501, %v615
    %v617 = vrot.slane %v422, %v616
    %v618 = vsel %vm506, %v617, %v613
    %v619 = vlaneseq
    %v620 = vshrl.u32 %v619, 7
    %v621 = vsub.s32 %v508, %v620
    %v622 = vrot.slane %v423, %v621
    %v623 = vsel %vm513, %v622, %v618
    %v624 = vlaneseq
    %v625 = vshrl.u32 %v624, 7
    %v626 = vsub.s32 %v515, %v625
    %v627 = vrot.slane %v424, %v626
    %v628 = vsel %vm520, %v627, %v623
    %v629 = vlaneseq
    %v630 = vshrl.u32 %v629, 7
    %v631 = vsub.s32 %v522, %v630
    %v632 = vrot.slane %v425, %v631
    %v633 = vsel %vm527, %v632, %v628
    %v634 = vlaneseq
    %v635 = vshrl.u32 %v634, 7
    %v636 = vsub.s32 %v529, %v635
    %v637 = vrot.slane %v426, %v636
    %v638 = vsel %vm534, %v637, %v633
    %v639 = vlaneseq
    %v640 = vshrl.u32 %v639, 7
    %v641 = vsub.s32 %v536, %v640
    %v642 = vrot.slane %v427, %v641
    %v643 = vsel %vm541, %v642, %v638
    %v644 = vlaneseq
    %v645 = vshrl.u32 %v644, 7
    %v646 = vsub.s32 %v543, %v645
    %v647 = vrot.slane %v428, %v646
    %v648 = vsel %vm548, %v647, %v643
    %v649 = vlaneseq
    %v650 = vshrl.u32 %v649, 7
    %v651 = vsub.s32 %v550, %v650
    %v652 = vrot.slane %v429, %v651
    %v653 = vsel %vm555, %v652, %v648
    %655 = vst [vmem:[#allocation3 + $0x1] sm:$0x1] %v653
    // Predicated region
    $region22: #{tpu_custom_call.1} parent=1 // pred_check
      _
    $region23: #{tpu_custom_call.1} parent=1 // pred_check_branch
      %657 = sbr.rel (0) target = $region25
    $region24: #{tpu_custom_call.1} parent=1 // pred_region
      %s659 = ssub.s32 32, 32
      %660 = vsyncadd [#allocation4], %s659
      %s662 = sshll.u32 [#allocation3], 4
      %s663 = int_to_ptr.vmem [resolvable:$true] %s662
      %665 = dma.vmem_to_hbm [thread:$0]  %s663, 32, %s5, [#allocation4]
    $region25: #{tpu_custom_call.1} parent=1 // pred_fallthru
      _
    // Predicated region
    $region26: #{tpu_custom_call.1} parent=1 // pred_check
      _
    $region27: #{tpu_custom_call.1} parent=1 // pred_check_branch
      %667 = sbr.rel (0) target = $region29
    $region28: #{tpu_custom_call.1} parent=1 // pred_region
      %668 = dma.done [#allocation4], 32
    $region29: #{tpu_custom_call.1} parent=1 // pred_fallthru
      _
    %669 = vsyncpa [#allocation4], 1

</llo_original>
